<compile_context>
chip_gen: v5e
topology: v5e:2x2
jax: 0.10.0
libtpu: 0.0.40
codegen_flags: <defaults>
</compile_context>

<pallas_src>
import functools

import jax
import jax.numpy as jnp
from jax.experimental import pallas as pl
from jax.experimental.pallas import tpu as pltpu


# ---------------------------------------------------------------------------
# Kernels
# ---------------------------------------------------------------------------
def _project_kernel(x_ref, wl_ref, xl_ref):
    """XL = X_tile @ W_l   (bf16 out; feeds the A @ XL aggregation)."""
    xl_ref[...] = jnp.dot(
        x_ref[...], wl_ref[...], preferred_element_type=jnp.float32
    ).astype(jnp.bfloat16)


def _aggregate_kernel(a_ref, xl_ref, x_ref, wr_ref, b_ref, inv_deg_ref,
                      o_ref, acc_ref, *, relu):
    """K-tiled mean aggregation + root branch for one row tile:
         acc += A_counts[i,k] @ XL[k]              (int8 -> bf16 in-kernel)
       at k == last:
         out = acc * inv_deg + X_tile @ W_r + b    (optionally ReLU'd)
    """
    k = pl.program_id(1)

    @pl.when(k == 0)
    def _():
        acc_ref[...] = jnp.zeros_like(acc_ref)

    a = a_ref[...].astype(jnp.float32).astype(jnp.bfloat16)  # int8 counts -> bf16
    acc_ref[...] += jnp.dot(a, xl_ref[...], preferred_element_type=jnp.float32)

    @pl.when(k == pl.num_programs(1) - 1)
    def _():
        xr = jnp.dot(x_ref[...], wr_ref[...],
                     preferred_element_type=jnp.float32) + b_ref[...]
        out = acc_ref[...] * inv_deg_ref[...] + xr
        if relu:
            out = jnp.maximum(out, 0.0)
        o_ref[...] = out


def _fused_kernel(a_ref, inv_deg_ref, x_ref, w1_ref, b1_ref, w2_ref, b2_ref,
                  logits_ref, emb_ref, *, hp, cp):
    """Both SAGEConv layers in one call (small graphs: everything in VMEM).
    A is read once; per-layer projection is a single fused [W_l | W_r] matmul."""
    a = a_ref[...].astype(jnp.float32).astype(jnp.bfloat16)   # int8 -> bf16
    inv_deg = inv_deg_ref[...]                                 # [N, 1] f32
    x = x_ref[...]                                             # [N, F] bf16

    # layer 1: h1 = relu(inv_deg * (A @ (X @ W1l)) + X @ W1r + b1)
    p1 = jnp.dot(x, w1_ref[...], preferred_element_type=jnp.float32)  # [N, 2*hp]
    xl1 = p1[:, :hp].astype(jnp.bfloat16)
    xr1 = p1[:, hp:] + b1_ref[...]
    agg1 = jnp.dot(a, xl1, preferred_element_type=jnp.float32)
    h1 = jnp.maximum(agg1 * inv_deg + xr1, 0.0)
    emb_ref[...] = h1                    # dropout(p=0.5) = identity (eval mode)

    # layer 2: logits = inv_deg * (A @ (h1 @ W2l)) + h1 @ W2r + b2
    h1b = h1.astype(jnp.bfloat16)
    p2 = jnp.dot(h1b, w2_ref[...], preferred_element_type=jnp.float32)  # [N, 2*cp]
    xl2 = p2[:, :cp].astype(jnp.bfloat16)
    xr2 = p2[:, cp:] + b2_ref[...]
    agg2 = jnp.dot(a, xl2, preferred_element_type=jnp.float32)
    logits_ref[...] = agg2 * inv_deg + xr2


# ---------------------------------------------------------------------------
# Planning helpers (generation-aware VMEM budgets, tile choice, padding)
# ---------------------------------------------------------------------------
def _round_up(v, m):
    return ((v + m - 1) // m) * m


def _vmem_capacity_bytes():
    """Physical VMEM of the attached chip (v7x: 64 MiB, v5e/v6e: 128 MiB)."""
    try:
        info = pltpu.get_tpu_info()
        cap = getattr(info, "vmem_capacity_bytes", None)
        if cap:
            return int(cap)
    except Exception:
        pass
    return 64 * 1024 * 1024   # conservative fallback (v7x)


def make_plan(num_nodes, num_node_features, num_classes, hidden_channels=16,
              *, force_tiled=False):
    """Decide fused-vs-tiled, tile sizes, node padding and the VMEM limit."""
    cap = _vmem_capacity_bytes()
    # ~75% of physical VMEM, capped at 96 MiB (v7x -> 48 MiB, v5e/v6e -> 96 MiB).
    vmem_limit = min((cap * 3) // 4, 96 * 1024 * 1024)
    budget = int(vmem_limit * 0.8)

    hp = _round_up(max(hidden_channels, 1), 128)
    cp_ = _round_up(max(num_classes, 1), 128)
    wp = max(hp, cp_)                           # widest padded output dim
    f = max(num_node_features, 1)
    fdim = max(f, hp)                           # layer-2 input width is hp
    n = max(num_nodes, 1)
    np32 = _round_up(n, 32)                     # int8 sublane tile alignment

    if not force_tiled:
        fused = (np32 * np32                    # A int8
                 + np32 * f * 2                 # X bf16
                 + np32 * (2 * hp + 2 * cp_) * 4  # fused projections (f32)
                 + np32 * wp * 4 * 4            # misc [N, wp] f32 temporaries
                 + (f * 2 * hp + hp * 2 * cp_) * 2)  # weights (bf16)
        if fused <= budget // 2:
            return {"mode": "fused", "n_pad": np32,
                    "vmem_limit_bytes": int(vmem_limit)}

    cands = [t for t in (512, 256, 128, 64, 32) if t <= np32] or [32]
    for tm in cands:
        for tk in cands:
            # double-buffered inputs/outputs + resident f32 accumulator
            work = 2 * (tm * tk                     # A int8 block
                        + tk * wp * 2               # XL bf16 block
                        + tm * fdim * 2             # X row tile bf16
                        + fdim * wp * 2 + wp * 4    # W_r + bias
                        + tm * 4                    # inv_deg
                        + tm * wp * 4) + tm * wp * 4
            if work <= budget:
                n_pad = _round_up(n, max(tm, tk))
                return {"mode": "tiled", "n_pad": n_pad, "tm": tm, "tk": tk,
                        "vmem_limit_bytes": int(vmem_limit)}
    return {"mode": "tiled", "n_pad": np32, "tm": 32, "tk": 32,
            "vmem_limit_bytes": int(vmem_limit)}


# ---------------------------------------------------------------------------
# Graph / parameter preparation (plain-JAX glue, run once per graph/model)
# ---------------------------------------------------------------------------
def build_adjacency(edge_index, num_nodes, plan):
    """Dense int8 edge-count matrix (padded to plan['n_pad']) + f32 inverse
    in-degree.  Counts (not 0/1) so duplicate edges average like PyG's
    scatter-mean; counts are exact in int8 up to 127 duplicates per pair."""
    del num_nodes  # padding target comes from the plan
    n_pad = plan["n_pad"]
    src = edge_index[0]
    dst = edge_index[1]
    counts = jnp.zeros((n_pad, n_pad), jnp.float32).at[dst, src].add(1.0)
    counts = jnp.minimum(counts, 127.0)
    deg = jnp.sum(counts, axis=1, keepdims=True)
    inv_deg = jnp.where(deg > 0.0, 1.0 / jnp.maximum(deg, 1.0), 0.0)
    return counts.astype(jnp.int8), inv_deg.astype(jnp.float32)


def init_params(key, num_node_features, num_classes, hidden_channels=16):
    ks = jax.random.split(key, 4)
    s1 = 1.0 / jnp.sqrt(num_node_features)
    s2 = 1.0 / jnp.sqrt(hidden_channels)
    return {
        "w1_l": jax.random.uniform(ks[0], (num_node_features, hidden_channels),
                                   jnp.float32, -s1, s1),
        "w1_r": jax.random.uniform(ks[1], (num_node_features, hidden_channels),
                                   jnp.float32, -s1, s1),
        "b1": jnp.zeros((hidden_channels,), jnp.float32),
        "w2_l": jax.random.uniform(ks[2], (hidden_channels, num_classes),
                                   jnp.float32, -s2, s2),
        "w2_r": jax.random.uniform(ks[3], (hidden_channels, num_classes),
                                   jnp.float32, -s2, s2),
        "b2": jnp.zeros((num_classes,), jnp.float32),
    }


def pad_params(raw, hidden_channels, num_classes):
    """Pad output dims to multiples of 128 (lane-dense stores), cast matmul
    weights to bf16 (native MXU path); biases stay f32.  Also stores the
    concatenated [W_l | W_r] forms used by the fused small-graph kernel."""
    hp = _round_up(max(hidden_channels, 1), 128)
    cp_ = _round_up(max(num_classes, 1), 128)
    dh = hp - hidden_channels
    dc = cp_ - num_classes
    w1_l = jnp.pad(raw["w1_l"], ((0, 0), (0, dh))).astype(jnp.bfloat16)
    w1_r = jnp.pad(raw["w1_r"], ((0, 0), (0, dh))).astype(jnp.bfloat16)
    b1 = jnp.pad(raw["b1"], (0, dh)).reshape(1, hp).astype(jnp.float32)
    w2_l = jnp.pad(raw["w2_l"], ((0, dh), (0, dc))).astype(jnp.bfloat16)
    w2_r = jnp.pad(raw["w2_r"], ((0, dh), (0, dc))).astype(jnp.bfloat16)
    b2 = jnp.pad(raw["b2"], (0, dc)).reshape(1, cp_).astype(jnp.float32)
    return {
        "w1_l": w1_l, "w1_r": w1_r, "b1": b1,
        "w2_l": w2_l, "w2_r": w2_r, "b2": b2,
        "w1_lr": jnp.concatenate([w1_l, w1_r], axis=1),
        "w2_lr": jnp.concatenate([w2_l, w2_r], axis=1),
    }


# ---------------------------------------------------------------------------
# Wrappers
# ---------------------------------------------------------------------------
def _sage_layer_tiled(a_int8, inv_deg, x_bf16, w_l, w_r, b, *, relu, tm, tk,
                      vmem_limit):
    """One SAGEConv layer: row-tiled projection, then K-tiled aggregation."""
    np_, f = x_bf16.shape
    outp = w_l.shape[1]                          # padded (multiple of 128)
    grid_rows = np_ // tm

    xl = pl.pallas_call(
        _project_kernel,
        grid=(grid_rows,),
        in_specs=[pl.BlockSpec((tm, f), lambda i: (i, 0)),
                  pl.BlockSpec((f, outp), lambda i: (0, 0))],
        out_specs=pl.BlockSpec((tm, outp), lambda i: (i, 0)),
        out_shape=jax.ShapeDtypeStruct((np_, outp), jnp.bfloat16),
        compiler_params=pltpu.CompilerParams(
            dimension_semantics=("parallel",),
            vmem_limit_bytes=vmem_limit),
    )(x_bf16, w_l)

    out = pl.pallas_call(
        functools.partial(_aggregate_kernel, relu=relu),
        grid=(grid_rows, np_ // tk),
        in_specs=[
            pl.BlockSpec((tm, tk), lambda i, k: (i, k)),     # A int8 block
            pl.BlockSpec((tk, outp), lambda i, k: (k, 0)),   # XL bf16 block
            pl.BlockSpec((tm, f), lambda i, k: (i, 0)),      # X row tile bf16
            pl.BlockSpec((f, outp), lambda i, k: (0, 0)),    # W_r bf16
            pl.BlockSpec((1, outp), lambda i, k: (0, 0)),    # bias f32
            pl.BlockSpec((tm, 1), lambda i, k: (i, 0)),      # 1/deg f32
        ],
        out_specs=pl.BlockSpec((tm, outp), lambda i, k: (i, 0)),
        out_shape=jax.ShapeDtypeStruct((np_, outp), jnp.float32),
        scratch_shapes=[pltpu.VMEM((tm, outp), jnp.float32)],
        compiler_params=pltpu.CompilerParams(
            dimension_semantics=("parallel", "arbitrary"),
            vmem_limit_bytes=vmem_limit),
    )(a_int8, xl, x_bf16, w_r, b, inv_deg)
    return out


def _fused_forward(x_bf16, a_int8, inv_deg, params, plan):
    n_pad = x_bf16.shape[0]
    hp = params["w1_l"].shape[1]
    cp_ = params["w2_l"].shape[1]
    vmem = pl.BlockSpec(memory_space=pltpu.MemorySpace.VMEM)
    logits_p, emb_p = pl.pallas_call(
        functools.partial(_fused_kernel, hp=hp, cp=cp_),
        in_specs=[vmem] * 7,
        out_specs=(vmem, vmem),
        out_shape=(
            jax.ShapeDtypeStruct((n_pad, cp_), jnp.float32),
            jax.ShapeDtypeStruct((n_pad, hp), jnp.float32),
        ),
        compiler_params=pltpu.CompilerParams(
            vmem_limit_bytes=plan["vmem_limit_bytes"]),
    )(a_int8, inv_deg, x_bf16,
      params["w1_lr"], params["b1"], params["w2_lr"], params["b2"])
    return logits_p, emb_p


def graphsage_forward(x, a_int8, inv_deg, params, plan, *, hidden_channels,
                      num_classes):
    """Returns (logits, embeddings) matching the PyTorch module (eval mode)."""
    n = x.shape[0]
    n_pad = plan["n_pad"]
    if n_pad > n:
        x = jnp.pad(x, ((0, n_pad - n), (0, 0)))
    x_bf16 = x.astype(jnp.bfloat16)

    if plan["mode"] == "fused":
        logits_p, emb_p = _fused_forward(x_bf16, a_int8, inv_deg, params, plan)
    else:
        tm, tk = plan["tm"], plan["tk"]
        lim = plan["vmem_limit_bytes"]
        emb_p = _sage_layer_tiled(a_int8, inv_deg, x_bf16,
                                  params["w1_l"], params["w1_r"], params["b1"],
                                  relu=True, tm=tm, tk=tk, vmem_limit=lim)
        # dropout(p=0.5) is identity in eval mode.
        h1_bf16 = emb_p.astype(jnp.bfloat16)
        logits_p = _sage_layer_tiled(a_int8, inv_deg, h1_bf16,
                                     params["w2_l"], params["w2_r"], params["b2"],
                                     relu=False, tm=tm, tk=tk, vmem_limit=lim)
    return logits_p[:n, :num_classes], emb_p[:n, :hidden_channels]


# ---------------------------------------------------------------------------
# Pure-JAX reference (same bf16 math/order as the kernels)
# ---------------------------------------------------------------------------
def _reference_forward(x, a_int8, inv_deg, params, *, hidden_channels,
                       num_classes):
    n = x.shape[0]
    n_pad = a_int8.shape[0]
    a = a_int8.astype(jnp.float32).astype(jnp.bfloat16)
    xp = jnp.pad(x, ((0, n_pad - n), (0, 0))).astype(jnp.bfloat16)

    def layer(xin, wl, wr, b, relu):
        xl = jnp.dot(xin, wl, preferred_element_type=jnp.float32).astype(jnp.bfloat16)
        agg = jnp.dot(a, xl, preferred_element_type=jnp.float32)
        xr = jnp.dot(xin, wr, preferred_element_type=jnp.float32) + b
        out = agg * inv_deg + xr
        return jnp.maximum(out, 0.0) if relu else out

    h1 = layer(xp, params["w1_l"], params["w1_r"], params["b1"], True)
    out = layer(h1.astype(jnp.bfloat16), params["w2_l"], params["w2_r"],
                params["b2"], False)
    return out[:n, :num_classes], h1[:n, :hidden_channels]


# ---------------------------------------------------------------------------
if __name__ == "__main__":
    num_nodes = 32
    num_node_features = 16
    hidden_channels = 16
    num_classes = 8
    num_edges = 64

    key = jax.random.PRNGKey(0)
    k_x, k_src, k_dst, k_p = jax.random.split(key, 4)

    x = jax.random.normal(k_x, (num_nodes, num_node_features), jnp.float32)
    src = jax.random.randint(k_src, (num_edges,), 0, num_nodes, jnp.int32)
    dst = jax.random.randint(k_dst, (num_edges,), 0, num_nodes, jnp.int32)
    edge_index = jnp.stack([src, dst], axis=0)          # [2, E]

    params = pad_params(
        init_params(k_p, num_node_features, num_classes, hidden_channels),
        hidden_channels, num_classes)

    # Plans + adjacency build are hoisted: once per graph, reused per forward.
    plan_auto = make_plan(num_nodes, num_node_features, num_classes,
                          hidden_channels)
    plan_tiled = make_plan(num_nodes, num_node_features, num_classes,
                           hidden_channels, force_tiled=True)
    a_auto, d_auto = build_adjacency(edge_index, num_nodes, plan_auto)
    a_tile, d_tile = build_adjacency(edge_index, num_nodes, plan_tiled)

    logits, embeddings = graphsage_forward(
        x, a_auto, d_auto, params, plan_auto,
        hidden_channels=hidden_channels, num_classes=num_classes)
    jax.block_until_ready((logits, embeddings))

    # Exercise the tiled (large-graph) path too and check it agrees.
    logits_t, embeddings_t = graphsage_forward(
        x, a_tile, d_tile, params, plan_tiled,
        hidden_channels=hidden_channels, num_classes=num_classes)
    jax.block_until_ready((logits_t, embeddings_t))

    logits_r, embeddings_r = _reference_forward(
        x, a_auto, d_auto, params,
        hidden_channels=hidden_channels, num_classes=num_classes)

    assert logits.shape == (num_nodes, num_classes)
    assert embeddings.shape == (num_nodes, hidden_channels)
    assert jnp.allclose(logits, logits_t, rtol=1e-3, atol=1e-3)
    assert jnp.allclose(embeddings, embeddings_t, rtol=1e-3, atol=1e-3)
    assert jnp.allclose(logits, logits_r, rtol=2e-2, atol=2e-2)
    assert jnp.allclose(embeddings, embeddings_r, rtol=2e-2, atol=2e-2)
    print("KERNEL_OK")
</pallas_src>

<mosaic_0001>
module attributes {stable_mosaic.version = 11 : i64} {
  func.func @_fused_kernel(%arg0: memref<32x32xi8, #tpu.memory_space<vmem>>, %arg1: memref<32x1xf32, #tpu.memory_space<vmem>>, %arg2: memref<32x16xbf16, #tpu.memory_space<vmem>>, %arg3: memref<16x256xbf16, #tpu.memory_space<vmem>>, %arg4: memref<1x128xf32, #tpu.memory_space<vmem>>, %arg5: memref<128x256xbf16, #tpu.memory_space<vmem>>, %arg6: memref<1x128xf32, #tpu.memory_space<vmem>>, %arg7: memref<32x128xf32, #tpu.memory_space<vmem>>, %arg8: memref<32x128xf32, #tpu.memory_space<vmem>>) attributes {dimension_semantics = [], scalar_prefetch = 0 : i64, scratch_operands = 0 : i64, tpu.core_type = #tpu.core_type<tc>} {
    %c0 = arith.constant 0 : index
    %c0_0 = arith.constant 0 : index
    %0 = vector.load %arg0[%c0, %c0_0] : memref<32x32xi8, #tpu.memory_space<vmem>>, vector<32x32xi8>
    %1 = arith.sitofp %0 : vector<32x32xi8> to vector<32x32xf32>
    %2 = arith.truncf %1 : vector<32x32xf32> to vector<32x32xbf16>
    %c0_1 = arith.constant 0 : index
    %c0_2 = arith.constant 0 : index
    %3 = vector.load %arg1[%c0_1, %c0_2] : memref<32x1xf32, #tpu.memory_space<vmem>>, vector<32x1xf32>
    %c0_3 = arith.constant 0 : index
    %c0_4 = arith.constant 0 : index
    %4 = vector.load %arg2[%c0_3, %c0_4] : memref<32x16xbf16, #tpu.memory_space<vmem>>, vector<32x16xbf16>
    %c0_5 = arith.constant 0 : index
    %c0_6 = arith.constant 0 : index
    %5 = vector.load %arg3[%c0_5, %c0_6] : memref<16x256xbf16, #tpu.memory_space<vmem>>, vector<16x256xbf16>
    %cst = arith.constant dense<0.000000e+00> : vector<32x256xf32>
    %6 = tpu.matmul %4, %5, %cst {dimension_numbers = #tpu.dot_dimension_numbers<[1], [0], [0], [1], [0, 0, 1, 1], [], []>} : vector<32x16xbf16>, vector<16x256xbf16>, vector<32x256xf32> -> vector<32x256xf32>
    %7 = vector.extract_strided_slice %6 {offsets = [0, 0], sizes = [32, 128], strides = [1, 1]} : vector<32x256xf32> to vector<32x128xf32>
    %8 = arith.truncf %7 : vector<32x128xf32> to vector<32x128xbf16>
    %9 = vector.extract_strided_slice %6 {offsets = [0, 128], sizes = [32, 128], strides = [1, 1]} : vector<32x256xf32> to vector<32x128xf32>
    %c0_7 = arith.constant 0 : index
    %c0_8 = arith.constant 0 : index
    %10 = vector.load %arg4[%c0_7, %c0_8] : memref<1x128xf32, #tpu.memory_space<vmem>>, vector<1x128xf32>
    %11 = vector.broadcast %10 : vector<1x128xf32> to vector<32x128xf32>
    %12 = arith.addf %9, %11 : vector<32x128xf32>
    %cst_9 = arith.constant dense<0.000000e+00> : vector<32x128xf32>
    %13 = tpu.matmul %2, %8, %cst_9 {dimension_numbers = #tpu.dot_dimension_numbers<[1], [0], [0], [1], [0, 0, 1, 1], [], []>} : vector<32x32xbf16>, vector<32x128xbf16>, vector<32x128xf32> -> vector<32x128xf32>
    %14 = vector.broadcast %3 : vector<32x1xf32> to vector<32x128xf32>
    %15 = arith.mulf %13, %14 : vector<32x128xf32>
    %16 = arith.addf %15, %12 : vector<32x128xf32>
    %cst_10 = arith.constant 0.000000e+00 : f32
    %17 = vector.broadcast %cst_10 : f32 to vector<32x128xf32>
    %18 = arith.maximumf %16, %17 : vector<32x128xf32>
    %c0_11 = arith.constant 0 : index
    %c0_12 = arith.constant 0 : index
    %19 = vector.load %arg8[%c0_11, %c0_12] : memref<32x128xf32, #tpu.memory_space<vmem>>, vector<32x128xf32>
    tpu.vector_store %arg8[%c0_11, %c0_12], %18 {strides = array<i32>} : memref<32x128xf32, #tpu.memory_space<vmem>>, vector<32x128xf32>,
    %20 = arith.truncf %18 : vector<32x128xf32> to vector<32x128xbf16>
    %c0_13 = arith.constant 0 : index
    %c0_14 = arith.constant 0 : index
    %21 = vector.load %arg5[%c0_13, %c0_14] : memref<128x256xbf16, #tpu.memory_space<vmem>>, vector<128x256xbf16>
    %cst_15 = arith.constant dense<0.000000e+00> : vector<32x256xf32>
    %22 = tpu.matmul %20, %21, %cst_15 {dimension_numbers = #tpu.dot_dimension_numbers<[1], [0], [0], [1], [0, 0, 1, 1], [], []>} : vector<32x128xbf16>, vector<128x256xbf16>, vector<32x256xf32> -> vector<32x256xf32>
    %23 = vector.extract_strided_slice %22 {offsets = [0, 0], sizes = [32, 128], strides = [1, 1]} : vector<32x256xf32> to vector<32x128xf32>
    %24 = arith.truncf %23 : vector<32x128xf32> to vector<32x128xbf16>
    %25 = vector.extract_strided_slice %22 {offsets = [0, 128], sizes = [32, 128], strides = [1, 1]} : vector<32x256xf32> to vector<32x128xf32>
    %c0_16 = arith.constant 0 : index
    %c0_17 = arith.constant 0 : index
    %26 = vector.load %arg6[%c0_16, %c0_17] : memref<1x128xf32, #tpu.memory_space<vmem>>, vector<1x128xf32>
    %27 = vector.broadcast %26 : vector<1x128xf32> to vector<32x128xf32>
    %28 = arith.addf %25, %27 : vector<32x128xf32>
    %cst_18 = arith.constant dense<0.000000e+00> : vector<32x128xf32>
    %29 = tpu.matmul %2, %24, %cst_18 {dimension_numbers = #tpu.dot_dimension_numbers<[1], [0], [0], [1], [0, 0, 1, 1], [], []>} : vector<32x32xbf16>, vector<32x128xbf16>, vector<32x128xf32> -> vector<32x128xf32>
    %30 = vector.broadcast %3 : vector<32x1xf32> to vector<32x128xf32>
    %31 = arith.mulf %29, %30 : vector<32x128xf32>
    %32 = arith.addf %31, %28 : vector<32x128xf32>
    %c0_19 = arith.constant 0 : index
    %c0_20 = arith.constant 0 : index
    %33 = vector.load %arg7[%c0_19, %c0_20] : memref<32x128xf32, #tpu.memory_space<vmem>>, vector<32x128xf32>
    tpu.vector_store %arg7[%c0_19, %c0_20], %32 {strides = array<i32>} : memref<32x128xf32, #tpu.memory_space<vmem>>, vector<32x128xf32>,
    return
  }
}

</mosaic_0001>

<llo_original>
// kernel: tpu_custom_call.1
$region0: #{tpu_custom_call.1}
  #allocation0 [shape = 'u32[]', space=smem, size = 0x4, offset = 0x4, fixed_abs, tag = 'smem constant byte address 0x4 - core index']
  #allocation1 [shape = 'u32[72,128]{1,0:T(1,128)}', space=vmem, size = 0x9000, scoped, tag = 'internal scratch']
  %s0 = inlined_call_operand.vmem [shape: s8[32,32], index: 0, kind: input, shape index: {}]
  %s1 = inlined_call_operand.vmem [shape: f32[32,1], index: 1, kind: input, shape index: {}]
  %s2 = inlined_call_operand.vmem [shape: bf16[32,16], index: 2, kind: input, shape index: {}]
  %s3 = inlined_call_operand.vmem [shape: bf16[16,256], index: 3, kind: input, shape index: {}]
  %s4 = inlined_call_operand.vmem [shape: f32[1,128], index: 4, kind: input, shape index: {}]
  %s5 = inlined_call_operand.hbm [shape: bf16[128,256], index: 5, kind: input, shape index: {}]
  %s6 = inlined_call_operand.vmem [shape: f32[1,128], index: 6, kind: input, shape index: {}]
  %s7 = inlined_call_operand.hbm [shape: f32[32,128], index: 7, kind: output, shape index: {0}]
  %s8 = inlined_call_operand.hbm [shape: f32[32,128], index: 8, kind: output, shape index: {1}]
  %9 = xla_tuple %s7, %s8
  %s10 = sld [smem:[#allocation0]]
  $region50: #{tpu_custom_call.1} parent=0
    _
  %s12 = ssub.s32 1, %s10
  %s13 = scalar_select 0, %s12, %s10
  $region1: #{tpu_custom_call.1} parent=0
    #allocation2 [shape = 'u8[65536]{0}', space=vmem, size = 0x10000, scoped, tag = 'input window, operand 5, single buffered']
    #allocation3 [shape = 's32[1]{0}', space=sflag, size = 0x4, scoped, tag = 'scoped memory for tpu_custom_call.1']
    #allocation4 [shape = 's32[1]{0}', space=sflag, size = 0x4, scoped, tag = 'scoped memory for tpu_custom_call.1']
    #allocation5 [shape = 'u8[16384]{0}', space=vmem, size = 0x4000, scoped, tag = 'output window, operand 0, single buffered']
    #allocation6 [shape = 'u8[16384]{0}', space=vmem, size = 0x4000, scoped, tag = 'output window, operand 1, single buffered']
    #allocation7 [shape = 's32[1]{0}', space=sflag, size = 0x4, scoped, tag = 'scoped memory for tpu_custom_call.1']
    %14 = vsyncpa [#allocation3], 0
    %15 = vsyncpa [#allocation4], 0
    %16 = vsyncpa [#allocation7], 0
    // Predicated region
    $region2: #{tpu_custom_call.1} parent=1 // pred_check
      _
    $region3: #{tpu_custom_call.1} parent=1 // pred_check_branch
      %18 = sbr.rel (0) target = $region5
    $region4: #{tpu_custom_call.1} parent=1 // pred_region
      _
    $region5: #{tpu_custom_call.1} parent=1 // pred_fallthru
      _
    // Predicated region
    $region6: #{tpu_custom_call.1} parent=1 // pred_check
      _
    $region7: #{tpu_custom_call.1} parent=1 // pred_check_branch
      %20 = sbr.rel (0) target = $region9
    $region8: #{tpu_custom_call.1} parent=1 // pred_region
      _
    $region9: #{tpu_custom_call.1} parent=1 // pred_fallthru
      _
    // Predicated region
    $region10: #{tpu_custom_call.1} parent=1 // pred_check
      _
    $region11: #{tpu_custom_call.1} parent=1 // pred_check_branch
      %22 = sbr.rel (0) target = $region13
    $region12: #{tpu_custom_call.1} parent=1 // pred_region
      _
    $region13: #{tpu_custom_call.1} parent=1 // pred_fallthru
      _
    // Predicated region
    $region14: #{tpu_custom_call.1} parent=1 // pred_check
      _
    $region15: #{tpu_custom_call.1} parent=1 // pred_check_branch
      %24 = sbr.rel (0) target = $region17
    $region16: #{tpu_custom_call.1} parent=1 // pred_region
      _
    $region17: #{tpu_custom_call.1} parent=1 // pred_fallthru
      _
    // Predicated region
    $region18: #{tpu_custom_call.1} parent=1 // pred_check
      _
    $region19: #{tpu_custom_call.1} parent=1 // pred_check_branch
      %26 = sbr.rel (0) target = $region21
    $region20: #{tpu_custom_call.1} parent=1 // pred_region
      _
    $region21: #{tpu_custom_call.1} parent=1 // pred_fallthru
      _
    // Predicated region
    $region22: #{tpu_custom_call.1} parent=1 // pred_check
      _
    $region23: #{tpu_custom_call.1} parent=1 // pred_check_branch
      %28 = sbr.rel (0) target = $region25
    $region24: #{tpu_custom_call.1} parent=1 // pred_region
      %30 = vsyncadd [#allocation3], 0
      %s31 = sshll.u32 %s5, 4
      %s32 = int_to_ptr.hbm [resolvable:$true] %s31
      %s33 = sshll.u32 [#allocation2], 4
      %s34 = int_to_ptr.vmem [resolvable:$true] %s33
      %39 = dma.hbm_to_vmem [thread:$0]  %s32, 2048, %s34, [#allocation3], 128, 128, 8
    $region25: #{tpu_custom_call.1} parent=1 // pred_fallthru
      _
    // Predicated region
    $region26: #{tpu_custom_call.1} parent=1 // pred_check
      _
    $region27: #{tpu_custom_call.1} parent=1 // pred_check_branch
      %41 = sbr.rel (0) target = $region29
    $region28: #{tpu_custom_call.1} parent=1 // pred_region
      _
    $region29: #{tpu_custom_call.1} parent=1 // pred_fallthru
      _
    // Predicated region
    $region30: #{tpu_custom_call.1} parent=1 // pred_check
      _
    $region31: #{tpu_custom_call.1} parent=1 // pred_check_branch
      %43 = sbr.rel (0) target = $region33
    $region32: #{tpu_custom_call.1} parent=1 // pred_region
      %45 = dma.done [#allocation3], 2048
    $region33: #{tpu_custom_call.1} parent=1 // pred_fallthru
      _
    %v47 = vld [vmem:[%s0] sm:$0xff]
    %v48 = vunpack.c.0.s8 %v47
    %v49 = vunpack.c.1.s8 %v47
    %v50 = vunpack.c.2.s8 %v47
    %v51 = vunpack.c.3.s8 %v47
    %v52 = vcvt.s32.f32 %v48
    %v53 = vcvt.s32.f32 %v49
    %v54 = vcvt.s32.f32 %v50
    %v55 = vcvt.s32.f32 %v51
    %v56 = vpack.c.bf16 %v53, %v52
    %v57 = vpack.c.bf16 %v55, %v54
    %v58 = vld [vmem:[%s1] sm:$0xff]
    %v59 = vld [vmem:[%s1 + $0x8] sm:$0xff]
    %v60 = vld [vmem:[%s1 + $0x10] sm:$0xff]
    %v61 = vld [vmem:[%s1 + $0x18] sm:$0xff]
    %v62 = vld [vmem:[%s2] sm:$0xf]
    %v63 = vld [vmem:[%s2 + $0x4] sm:$0xf]
    %v64 = vld [vmem:[%s2 + $0x8] sm:$0xf]
    %v65 = vld [vmem:[%s2 + $0xc] sm:$0xf]
    %v66 = vld [vmem:[%s3] sm:$0xff]
    %v67 = vld [vmem:[%s3 + $0x8] sm:$0xff]
    %v72 = vunpack.c.l.b16 %v62
    %v73 = vunpack.c.l.b16 %v63
    %v74 = vunpack.c.l.b16 %v64
    %v75 = vunpack.c.l.b16 %v65
    %v76 = vpack.c.b16 %v73, %v72
    %v77 = vpack.c.b16 %v75, %v74
    %v80 = vunpack.c.l.b16 %v66
    %v81 = vunpack.c.h.b16 %v66
    %v82 = vunpack.c.l.b16 %v67
    %v83 = vunpack.c.h.b16 %v67
    %v84 = vpack.c.b16 %v82, %v80
    %v85 = vpack.c.b16 %v83, %v81
    %vm88 = vcmask 130048
    %v90 = vsel %vm88, %v76, 0
    %v93 = vsel %vm88, %v77, 0
    %95 = vmatpush.bf16.msra.mxu0 0
    %96 = vmatpush.bf16.msra.mxu0 0
    %97 = vmatpush.bf16.msra.mxu0 0
    %98 = vmatpush.bf16.msra.mxu0 0
    %99 = vmatpush.bf16.msra.mxu0 0
    %100 = vmatpush.bf16.msra.mxu0 0
    %101 = vmatpush.bf16.msra.mxu0 0
    %102 = vmatpush.bf16.msra.mxu0 %v84
    %103 = vmatmul.bf16.gmra.mxu0 %v90
    %v104 = vpop.f32.mrf.mxu0
    %v105 = vadd.f32 0.0, %v104
    %v106 = vpop.f32.mrf.mxu0
    %v107 = vadd.f32 0.0, %v106
    %108 = vmatmul.bf16.gmra.mxu0 %v93
    %v109 = vpop.f32.mrf.mxu0
    %v110 = vadd.f32 0.0, %v109
    %v111 = vpop.f32.mrf.mxu0
    %v112 = vadd.f32 0.0, %v111
    %113 = vdwg.mxu0
    %114 = vmatpush.bf16.msra.mxu0 0
    %115 = vmatpush.bf16.msra.mxu0 0
    %116 = vmatpush.bf16.msra.mxu0 0
    %117 = vmatpush.bf16.msra.mxu0 0
    %118 = vmatpush.bf16.msra.mxu0 0
    %119 = vmatpush.bf16.msra.mxu0 0
    %120 = vmatpush.bf16.msra.mxu0 0
    %121 = vmatpush.bf16.msra.mxu0 %v85
    %122 = vmatmul.bf16.gmra.mxu0 %v90
    %v123 = vpop.f32.mrf.mxu0
    %v124 = vadd.f32 0.0, %v123
    %v125 = vpop.f32.mrf.mxu0
    %v126 = vadd.f32 0.0, %v125
    %127 = vmatmul.bf16.gmra.mxu0 %v93
    %v128 = vpop.f32.mrf.mxu0
    %v129 = vadd.f32 0.0, %v128
    %v130 = vpop.f32.mrf.mxu0
    %v131 = vadd.f32 0.0, %v130
    %132 = vdwg.mxu0
    %v133 = vpack.c.bf16 %v107, %v105
    %v134 = vpack.c.bf16 %v112, %v110
    %v135 = vld [vmem:[%s4] sm:$0x1]
    %v137 = vperm.slane %v135, 0
    %v139 = vadd.f32 %v124, %v137
    %v140 = vadd.f32 %v126, %v137
    %v141 = vadd.f32 %v129, %v137
    %v142 = vadd.f32 %v131, %v137
    %vm143 = vcmask 261120
    %v145 = vsel %vm143, %v56, 0
    %v148 = vsel %vm143, %v57, 0
    %150 = vmatpush.bf16.msra.mxu0 0
    %151 = vmatpush.bf16.msra.mxu0 0
    %152 = vmatpush.bf16.msra.mxu0 0
    %153 = vmatpush.bf16.msra.mxu0 0
    %154 = vmatpush.bf16.msra.mxu0 0
    %155 = vmatpush.bf16.msra.mxu0 0
    %156 = vmatpush.bf16.msra.mxu0 %v134
    %157 = vmatpush.bf16.msra.mxu0 %v133
    %158 = vmatmul.bf16.gmra.mxu0 %v145
    %v159 = vpop.f32.mrf.mxu0
    %v160 = vadd.f32 0.0, %v159
    %v161 = vpop.f32.mrf.mxu0
    %v162 = vadd.f32 0.0, %v161
    %163 = vmatmul.bf16.gmra.mxu0 %v148
    %v164 = vpop.f32.mrf.mxu0
    %v165 = vadd.f32 0.0, %v164
    %v166 = vpop.f32.mrf.mxu0
    %v167 = vadd.f32 0.0, %v166
    %168 = vdwg.mxu0
    %170 = vset.pattern.permute.xlu0 0
    %171 = vperm.xlu0 %170, %v58
    %v172 = vpop.permute.xlu0 %171
    %175 = vset.pattern.permute.xlu0 0
    %176 = vperm.xlu0 %175, %v59
    %v177 = vpop.permute.xlu0 %176
    %180 = vset.pattern.permute.xlu0 0
    %181 = vperm.xlu0 %180, %v60
    %v182 = vpop.permute.xlu0 %181
    %185 = vset.pattern.permute.xlu0 0
    %186 = vperm.xlu0 %185, %v61
    %v187 = vpop.permute.xlu0 %186
    %v189 = vmul.f32 %v160, %v172
    %v190 = vmul.f32 %v162, %v177
    %v191 = vmul.f32 %v165, %v182
    %v192 = vmul.f32 %v167, %v187
    %v193 = vadd.f32 %v189, %v139
    %v194 = vadd.f32 %v190, %v140
    %v195 = vadd.f32 %v191, %v141
    %v196 = vadd.f32 %v192, %v142
    %v197 = vmax.f32 %v193, 0.0
    %v198 = vmax.f32 %v194, 0.0
    %v199 = vmax.f32 %v195, 0.0
    %v200 = vmax.f32 %v196, 0.0
    %201 = vst [vmem:[#allocation6] sm:$0xff] %v197
    %202 = vst [vmem:[#allocation6 + $0x8] sm:$0xff] %v198
    %203 = vst [vmem:[#allocation6 + $0x10] sm:$0xff] %v199
    %204 = vst [vmem:[#allocation6 + $0x18] sm:$0xff] %v200
    %v205 = vpack.c.bf16 %v198, %v197
    %v206 = vpack.c.bf16 %v200, %v199
    %v207 = vld [vmem:[#allocation2] sm:$0xff]
    %v208 = vld [vmem:[#allocation2 + $0x8] sm:$0xff]
    %v209 = vld [vmem:[#allocation2 + $0x10] sm:$0xff]
    %v210 = vld [vmem:[#allocation2 + $0x18] sm:$0xff]
    %v211 = vld [vmem:[#allocation2 + $0x20] sm:$0xff]
    %v212 = vld [vmem:[#allocation2 + $0x28] sm:$0xff]
    %v213 = vld [vmem:[#allocation2 + $0x30] sm:$0xff]
    %v214 = vld [vmem:[#allocation2 + $0x38] sm:$0xff]
    %v215 = vld [vmem:[#allocation2 + $0x40] sm:$0xff]
    %v216 = vld [vmem:[#allocation2 + $0x48] sm:$0xff]
    %v217 = vld [vmem:[#allocation2 + $0x50] sm:$0xff]
    %v218 = vld [vmem:[#allocation2 + $0x58] sm:$0xff]
    %v219 = vld [vmem:[#allocation2 + $0x60] sm:$0xff]
    %v220 = vld [vmem:[#allocation2 + $0x68] sm:$0xff]
    %v221 = vld [vmem:[#allocation2 + $0x70] sm:$0xff]
    %v222 = vld [vmem:[#allocation2 + $0x78] sm:$0xff]
    %v239 = vunpack.c.l.b16 %v207
    %v240 = vunpack.c.h.b16 %v207
    %v241 = vunpack.c.l.b16 %v208
    %v242 = vunpack.c.h.b16 %v208
    %v243 = vunpack.c.l.b16 %v209
    %v244 = vunpack.c.h.b16 %v209
    %v245 = vunpack.c.l.b16 %v210
    %v246 = vunpack.c.h.b16 %v210
    %v247 = vunpack.c.l.b16 %v211
    %v248 = vunpack.c.h.b16 %v211
    %v249 = vunpack.c.l.b16 %v212
    %v250 = vunpack.c.h.b16 %v212
    %v251 = vunpack.c.l.b16 %v213
    %v252 = vunpack.c.h.b16 %v213
    %v253 = vunpack.c.l.b16 %v214
    %v254 = vunpack.c.h.b16 %v214
    %v255 = vunpack.c.l.b16 %v215
    %v256 = vunpack.c.h.b16 %v215
    %v257 = vunpack.c.l.b16 %v216
    %v258 = vunpack.c.h.b16 %v216
    %v259 = vunpack.c.l.b16 %v217
    %v260 = vunpack.c.h.b16 %v217
    %v261 = vunpack.c.l.b16 %v218
    %v262 = vunpack.c.h.b16 %v218
    %v263 = vunpack.c.l.b16 %v219
    %v264 = vunpack.c.h.b16 %v219
    %v265 = vunpack.c.l.b16 %v220
    %v266 = vunpack.c.h.b16 %v220
    %v267 = vunpack.c.l.b16 %v221
    %v268 = vunpack.c.h.b16 %v221
    %v269 = vunpack.c.l.b16 %v222
    %v270 = vunpack.c.h.b16 %v222
    %v271 = vpack.c.b16 %v241, %v239
    %v272 = vpack.c.b16 %v242, %v240
    %v273 = vpack.c.b16 %v245, %v243
    %v274 = vpack.c.b16 %v246, %v244
    %v275 = vpack.c.b16 %v249, %v247
    %v276 = vpack.c.b16 %v250, %v248
    %v277 = vpack.c.b16 %v253, %v251
    %v278 = vpack.c.b16 %v254, %v252
    %v279 = vpack.c.b16 %v257, %v255
    %v280 = vpack.c.b16 %v258, %v256
    %v281 = vpack.c.b16 %v261, %v259
    %v282 = vpack.c.b16 %v262, %v260
    %v283 = vpack.c.b16 %v265, %v263
    %v284 = vpack.c.b16 %v266, %v264
    %v285 = vpack.c.b16 %v269, %v267
    %v286 = vpack.c.b16 %v270, %v268
    %303 = vmatpush.bf16.msra.mxu0 %v285
    %304 = vmatpush.bf16.msra.mxu0 %v283
    %305 = vmatpush.bf16.msra.mxu0 %v281
    %306 = vmatpush.bf16.msra.mxu0 %v279
    %307 = vmatpush.bf16.msra.mxu0 %v277
    %308 = vmatpush.bf16.msra.mxu0 %v275
    %309 = vmatpush.bf16.msra.mxu0 %v273
    %310 = vmatpush.bf16.msra.mxu0 %v271
    %311 = vmatmul.bf16.gmra.mxu0 %v205
    %v312 = vpop.f32.mrf.mxu0
    %v313 = vadd.f32 0.0, %v312
    %v314 = vpop.f32.mrf.mxu0
    %v315 = vadd.f32 0.0, %v314
    %316 = vmatmul.bf16.gmra.mxu0 %v206
    %v317 = vpop.f32.mrf.mxu0
    %v318 = vadd.f32 0.0, %v317
    %v319 = vpop.f32.mrf.mxu0
    %v320 = vadd.f32 0.0, %v319
    %321 = vdwg.mxu0
    %322 = vmatpush.bf16.msra.mxu0 %v286
    %323 = vmatpush.bf16.msra.mxu0 %v284
    %324 = vmatpush.bf16.msra.mxu0 %v282
    %325 = vmatpush.bf16.msra.mxu0 %v280
    %326 = vmatpush.bf16.msra.mxu0 %v278
    %327 = vmatpush.bf16.msra.mxu0 %v276
    %328 = vmatpush.bf16.msra.mxu0 %v274
    %329 = vmatpush.bf16.msra.mxu0 %v272
    %330 = vmatmul.bf16.gmra.mxu0 %v205
    %v331 = vpop.f32.mrf.mxu0
    %v332 = vadd.f32 0.0, %v331
    %v333 = vpop.f32.mrf.mxu0
    %v334 = vadd.f32 0.0, %v333
    %335 = vmatmul.bf16.gmra.mxu0 %v206
    %v336 = vpop.f32.mrf.mxu0
    %v337 = vadd.f32 0.0, %v336
    %v338 = vpop.f32.mrf.mxu0
    %v339 = vadd.f32 0.0, %v338
    %340 = vdwg.mxu0
    %v341 = vpack.c.bf16 %v315, %v313
    %v342 = vpack.c.bf16 %v320, %v318
    %v343 = vld [vmem:[%s6] sm:$0x1]
    %v345 = vperm.slane %v343, 0
    %v347 = vadd.f32 %v332, %v345
    %v348 = vadd.f32 %v334, %v345
    %v349 = vadd.f32 %v337, %v345
    %v350 = vadd.f32 %v339, %v345
    %351 = vmatpush.bf16.msra.mxu0 0
    %352 = vmatpush.bf16.msra.mxu0 0
    %353 = vmatpush.bf16.msra.mxu0 0
    %354 = vmatpush.bf16.msra.mxu0 0
    %355 = vmatpush.bf16.msra.mxu0 0
    %356 = vmatpush.bf16.msra.mxu0 0
    %357 = vmatpush.bf16.msra.mxu0 %v342
    %358 = vmatpush.bf16.msra.mxu0 %v341
    %359 = vmatmul.bf16.gmra.mxu0 %v145
    %v360 = vpop.f32.mrf.mxu0
    %v361 = vadd.f32 0.0, %v360
    %v362 = vpop.f32.mrf.mxu0
    %v363 = vadd.f32 0.0, %v362
    %364 = vmatmul.bf16.gmra.mxu0 %v148
    %v365 = vpop.f32.mrf.mxu0
    %v366 = vadd.f32 0.0, %v365
    %v367 = vpop.f32.mrf.mxu0
    %v368 = vadd.f32 0.0, %v367
    %369 = vdwg.mxu0
    %v370 = vmul.f32 %v361, %v172
    %v371 = vmul.f32 %v363, %v177
    %v372 = vmul.f32 %v366, %v182
    %v373 = vmul.f32 %v368, %v187
    %v374 = vadd.f32 %v370, %v347
    %v375 = vadd.f32 %v371, %v348
    %v376 = vadd.f32 %v372, %v349
    %v377 = vadd.f32 %v373, %v350
    %378 = vst [vmem:[#allocation5] sm:$0xff] %v374
    %379 = vst [vmem:[#allocation5 + $0x8] sm:$0xff] %v375
    %380 = vst [vmem:[#allocation5 + $0x10] sm:$0xff] %v376
    %381 = vst [vmem:[#allocation5 + $0x18] sm:$0xff] %v377
    // Predicated region
    $region34: #{tpu_custom_call.1} parent=1 // pred_check
      _
    $region35: #{tpu_custom_call.1} parent=1 // pred_check_branch
      %383 = sbr.rel (0) target = $region37
    $region36: #{tpu_custom_call.1} parent=1 // pred_region
      %385 = vsyncadd [#allocation4], 0
      %s386 = sshll.u32 [#allocation5], 4
      %s387 = int_to_ptr.vmem [resolvable:$true] %s386
      %s388 = sshll.u32 %s7, 4
      %s389 = int_to_ptr.hbm [resolvable:$true] %s388
      %394 = dma.vmem_to_hbm [thread:$0]  %s387, 512, %s389, [#allocation4], 128, 128, 8
    $region37: #{tpu_custom_call.1} parent=1 // pred_fallthru
      _
    // Predicated region
    $region38: #{tpu_custom_call.1} parent=1 // pred_check
      _
    $region39: #{tpu_custom_call.1} parent=1 // pred_check_branch
      %396 = sbr.rel (0) target = $region41
    $region40: #{tpu_custom_call.1} parent=1 // pred_region
      %398 = vsyncadd [#allocation7], 0
      %s399 = sshll.u32 [#allocation6], 4
      %s400 = int_to_ptr.vmem [resolvable:$true] %s399
      %s401 = sshll.u32 %s8, 4
      %s402 = int_to_ptr.hbm [resolvable:$true] %s401
      %407 = dma.vmem_to_hbm [thread:$0]  %s400, 512, %s402, [#allocation7], 128, 128, 8
    $region41: #{tpu_custom_call.1} parent=1 // pred_fallthru
      _
    // Predicated region
    $region42: #{tpu_custom_call.1} parent=1 // pred_check
      _
    $region43: #{tpu_custom_call.1} parent=1 // pred_check_branch
      %409 = sbr.rel (0) target = $region45
    $region44: #{tpu_custom_call.1} parent=1 // pred_region
      %411 = dma.done [#allocation4], 512
    $region45: #{tpu_custom_call.1} parent=1 // pred_fallthru
      _
    // Predicated region
    $region46: #{tpu_custom_call.1} parent=1 // pred_check
      _
    $region47: #{tpu_custom_call.1} parent=1 // pred_check_branch
      %413 = sbr.rel (0) target = $region49
    $region48: #{tpu_custom_call.1} parent=1 // pred_region
      %415 = dma.done [#allocation7], 512
    $region49: #{tpu_custom_call.1} parent=1 // pred_fallthru
      _
    %416 = vsyncpa [#allocation3], 1
    %417 = vsyncpa [#allocation4], 1
    %418 = vsyncpa [#allocation7], 1

</llo_original>
